<compile_context>
chip_gen: v7x
topology: tpu7x:2x2x1
jax: 0.10.0
libtpu: 0.0.40
codegen_flags: <defaults>
</compile_context>

<pallas_src>
import functools

import numpy as np
import jax
import jax.numpy as jnp
from jax import lax
from jax.experimental import pallas as pl
from jax.experimental.pallas import tpu as pltpu

KH, KW = 12, 3          # conv kernel
TAPS = KH // 2          # super-row taps after the sj-fold
PH, PW = 5, 1           # conv padding
ALPHA = 0.2             # LeakyReLU negative slope


# ----------------------------------------------------------------------------
# Pallas kernel: fused (folded space-to-depth) conv + bias + LeakyReLU.
# ----------------------------------------------------------------------------
def _fused_conv_kernel(xs2_ref, w_ref, b_ref, o_ref, *, tmo, tmi, g, alpha):
    """xs2_ref: (1, hs, g, K)   folded s2d input, full image (resident over M)
       w_ref  : (6, K, N)       folded block-banded conv weights
       b_ref  : (1, N)          expanded bias (float32)
       o_ref  : (1, tmo*g, N)   this M-block's output rows (rows=(oh,g),
                                 cols=(q,cout))"""
    taps, K, N = w_ref.shape
    m = pl.program_id(1)
    nsub = tmo // tmi
    for sub in range(nsub):                       # static unroll (<= 4)
        r0 = m * tmo + sub * tmi                  # super-row offset into xs2
        acc = jnp.zeros((tmi * g, N), jnp.float32)
        for si in range(taps):                    # 6 contiguous taps, unrolled
            lhs = xs2_ref[0, pl.ds(r0 + si, tmi), :, :]   # (tmi, g, K)
            lhs = lhs.reshape(tmi * g, K)                  # g % 8 == 0, K % 128 == 0
            acc = acc + jnp.dot(lhs, w_ref[si],
                                preferred_element_type=jnp.float32)
        acc = acc + b_ref[...]                             # (1, N) broadcast
        acc = jnp.where(acc >= 0.0, acc, alpha * acc)      # LeakyReLU
        o_ref[0, pl.ds(sub * tmi * g, tmi * g), :] = acc.astype(o_ref.dtype)


# ----------------------------------------------------------------------------
# Weight expansion + sj-fold (numpy, once at parameter-prep time).
# ----------------------------------------------------------------------------
def expand_conv_weight(w, sw):
    """Expand (12, 3, Cin, Cout) -> (6, 4*sw*Cin, (sw//2)*Cout) block-banded
    GEMM weights matching the folded (2, sw)+right-neighbour s2d layout."""
    kh, kw, cin, cout = w.shape
    assert kh % 2 == 0 and kw <= sw + 2
    q = sw // 2
    # w2[si, sj, di, dw, ci, qq, co]
    w2 = np.zeros((kh // 2, 2, 2, sw, cin, q, cout), np.float32)
    for i in range(kh):
        si, di = divmod(i, 2)
        for j in range(kw):
            for qq in range(q):
                sj, dw = divmod(2 * qq + j, sw)
                w2[si, sj, di, dw, :, qq, :] = w[i, j]
    # fold sj into the contraction: K ordering = (sj, di, dw, ci)
    return w2.reshape(kh // 2, 2 * 2 * sw * cin, q * cout)


def prepare_conv_params(raw_conv, input_hw, dtype=jnp.bfloat16):
    """Per layer: pick sw so N = (sw/2)*Cout >= 128 (lane-dense output, good
    MXU N on all generations) and precompute folded weights / bias."""
    h, w = input_hw
    prepared = []
    for (wt, b) in raw_conv:
        _, _, _, cout = wt.shape
        sw = max(2, 2 * ((128 + cout - 1) // cout))
        sw = 1 << (sw - 1).bit_length()                    # power of two
        while sw > 2 and (w % sw != 0 or sw > w):
            sw //= 2
        assert w % sw == 0 and h % 2 == 0, (h, w, sw)
        w3 = expand_conv_weight(np.asarray(wt, np.float32), sw)
        b2 = np.tile(np.asarray(b, np.float32), sw // 2)[None, :]
        prepared.append(dict(sw=sw, cout=cout,
                             w3=jnp.asarray(w3, dtype),
                             b2=jnp.asarray(b2, jnp.float32)))
        h, w = h // 2, w // 2
    return prepared


def _choose_tiles(ho, g):
    """Inner tile ~128 output rows (f32 acc can stay in vregs); outer grid
    block ~512 rows (pipeline depth without excessive per-step overhead)."""
    tmi = max(1, min(ho, max(1, 128 // g)))
    while ho % tmi:
        tmi -= 1
    tmo = max(tmi, min(ho, max(1, 512 // g)))
    tmo = max(tmi, (tmo // tmi) * tmi)
    while tmo > tmi and ho % tmo:
        tmo -= tmi
    if ho % tmo:
        tmo = tmi
    return tmo, tmi


# ----------------------------------------------------------------------------
# One conv layer (wrapper does a single cheap pad + s2d + neighbour-fold copy).
# ----------------------------------------------------------------------------
def fused_conv2d(x, w3, b2, *, sw, cout, alpha=ALPHA):
    """LeakyReLU(Conv2d(x; k=(12,3), s=(2,2), p=(5,1)) + b), x NHWC."""
    bsz, h, w, cin = x.shape
    assert h % 2 == 0 and w % sw == 0, (h, w, sw)
    ho, wo = h // 2, w // 2
    q = sw // 2
    hs = ho + PH                  # (h + 2*5) / 2
    gp1 = w // sw + 1             # super-columns in the padded width (w + sw)
    g = gp1 - 1                   # output column groups, g * q == wo
    k1 = 2 * sw * cin
    kk = 2 * k1                   # folded contraction per tap
    n = q * cout
    dtype = w3.dtype
    assert w3.shape == (TAPS, kk, n), (w3.shape, (TAPS, kk, n))

    # conv padding (5, 1) plus sw-1 extra zero cols (they only ever meet zero
    # weights), space-to-depth by (2, sw), then fold each super-column with its
    # right neighbour along the feature axis (sj-fold -> 6 taps, K = 2*k1).
    xp = jnp.pad(x, ((0, 0), (PH, PH), (PW, sw - 1), (0, 0)))
    xs = xp.reshape(bsz, hs, 2, gp1, sw, cin).transpose(0, 1, 3, 2, 4, 5)
    xs = xs.reshape(bsz, hs, gp1, k1)
    xs2 = jnp.concatenate([xs[:, :, :g, :], xs[:, :, 1:, :]], axis=-1)
    xs2 = xs2.astype(dtype)                                # (bsz, hs, g, kk)

    tmo, tmi = _choose_tiles(ho, g)
    mo = ho // tmo

    kernel = functools.partial(_fused_conv_kernel, tmo=tmo, tmi=tmi, g=g,
                               alpha=alpha)
    itemsize = jnp.dtype(dtype).itemsize
    flops = 2 * bsz * (ho * g) * (TAPS * kk) * n
    bytes_accessed = (bsz * hs * g * kk * itemsize          # xs2
                      + TAPS * kk * n * itemsize            # weights
                      + n * 4                               # bias
                      + bsz * ho * g * n * itemsize)        # output

    out = pl.pallas_call(
        kernel,
        out_shape=jax.ShapeDtypeStruct((bsz, ho * g, n), dtype),
        grid=(bsz, mo),
        in_specs=[
            pl.BlockSpec((1, hs, g, kk), lambda b, m: (b, 0, 0, 0)),
            pl.BlockSpec((TAPS, kk, n), lambda b, m: (0, 0, 0)),
            pl.BlockSpec((1, n), lambda b, m: (0, 0)),
        ],
        out_specs=pl.BlockSpec((1, tmo * g, n), lambda b, m: (b, m, 0)),
        compiler_params=pltpu.CompilerParams(
            dimension_semantics=("parallel", "parallel"),
            vmem_limit_bytes=28 * 1024 * 1024,
        ),
        cost_estimate=pl.CostEstimate(flops=flops, transcendentals=0,
                                      bytes_accessed=bytes_accessed),
    )(xs2, w3, b2)
    # rows (ho, g) x cols (q, cout) in row-major order == (ho, wo, cout).
    return out.reshape(bsz, ho, wo, cout)


# ----------------------------------------------------------------------------
# Full model forward (matches the PyTorch module's semantics).
# ----------------------------------------------------------------------------
def orca_forward(x_nchw, conv_params, fc_params, *, alpha=ALPHA):
    bsz = x_nchw.shape[0]
    y = jnp.transpose(x_nchw, (0, 2, 3, 1))                 # NCHW -> NHWC
    for p in conv_params:
        y = fused_conv2d(y, p["w3"], p["b2"], sw=p["sw"], cout=p["cout"],
                         alpha=alpha)
    # match PyTorch: flatten in NCHW order before the fc
    feats = jnp.transpose(y, (0, 3, 1, 2)).reshape(bsz, -1).astype(jnp.float32)
    fc_w, fc_b = fc_params
    # tiny (B, 2048) @ (2048, 1): plain JAX — a Pallas launch would cost more
    # than the math itself.
    return feats @ fc_w + fc_b


# ----------------------------------------------------------------------------
# Synthetic parameters + pure-XLA reference (for validation only).
# ----------------------------------------------------------------------------
def init_raw_params(key, *, scale=8, final_size=256):
    chans = [1, scale, 2 * scale, 4 * scale, 8 * scale,
             16 * scale, 32 * scale, 32 * scale]
    conv = []
    for li in range(7):
        key, kw_, kb_ = jax.random.split(key, 3)
        w = 0.05 * jax.random.normal(
            kw_, (KH, KW, chans[li], chans[li + 1]), jnp.float32)
        b = 0.05 * jax.random.normal(kb_, (chans[li + 1],), jnp.float32)
        conv.append((w, b))
    key, kw_, kb_ = jax.random.split(key, 3)
    fc_w = 0.05 * jax.random.normal(kw_, (final_size * scale, 1), jnp.float32)
    fc_b = 0.05 * jax.random.normal(kb_, (1,), jnp.float32)
    return conv, (fc_w, fc_b)


def _reference_conv_layer(x, wt, b, alpha=ALPHA):
    y = lax.conv_general_dilated(
        x, wt, window_strides=(2, 2), padding=((PH, PH), (PW, PW)),
        dimension_numbers=("NHWC", "HWIO", "NHWC"),
        precision=lax.Precision.HIGHEST)
    y = y + b
    return jnp.where(y >= 0.0, y, alpha * y)


def reference_forward(x_nchw, raw_conv, fc_params, *, alpha=ALPHA):
    bsz = x_nchw.shape[0]
    y = jnp.transpose(x_nchw, (0, 2, 3, 1))
    for (wt, b) in raw_conv:
        y = _reference_conv_layer(y, wt, b, alpha)
    feats = jnp.transpose(y, (0, 3, 1, 2)).reshape(bsz, -1)
    return feats @ fc_params[0] + fc_params[1]


# ----------------------------------------------------------------------------
if __name__ == "__main__":
    root = jax.random.PRNGKey(0)
    k_x, k_p, k_t = jax.random.split(root, 3)

    # --- unit check: fused conv kernel vs lax.conv (float32, tight tolerance) --
    for (cin, cout, sw, hh, ww) in [(4, 8, 8, 16, 64), (1, 8, 32, 16, 256)]:
        kk_ = jax.random.split(jax.random.fold_in(k_t, 100 * cin + cout), 3)
        xt = jax.random.normal(kk_[0], (2, hh, ww, cin), jnp.float32)
        wt = 0.1 * jax.random.normal(kk_[1], (KH, KW, cin, cout), jnp.float32)
        bt = 0.1 * jax.random.normal(kk_[2], (cout,), jnp.float32)
        w3 = jnp.asarray(expand_conv_weight(np.asarray(wt), sw), jnp.float32)
        b2 = jnp.asarray(np.tile(np.asarray(bt), sw // 2)[None, :], jnp.float32)
        got = fused_conv2d(xt, w3, b2, sw=sw, cout=cout)
        want = _reference_conv_layer(xt, wt, bt)
        assert got.shape == want.shape, (got.shape, want.shape)
        max_err = float(jnp.max(jnp.abs(got - want)))
        assert max_err < 1e-3, f"fused conv mismatch: max abs err {max_err}"

    # --- full model -----------------------------------------------------------
    # smallest NCHW input consistent with the module's fixed fc (256*8 = 2048):
    # 7 stride-2 convs take (128, 1024) -> (1, 8) and 256 ch * 1 * 8 = 2048.
    x = jax.random.normal(k_x, (2, 1, 128, 1024), jnp.float32)
    raw_conv, fc_params = init_raw_params(k_p)
    conv_params = prepare_conv_params(raw_conv, input_hw=(128, 1024),
                                      dtype=jnp.bfloat16)

    fwd = jax.jit(lambda inp: orca_forward(inp, conv_params, fc_params))
    out = jax.block_until_ready(fwd(x))
    assert out.shape == (2, 1), out.shape
    assert bool(jnp.all(jnp.isfinite(out)))

    # loose end-to-end sanity check (Pallas path runs bf16 activations with f32
    # accumulation, reference is f32 XLA).
    ref = reference_forward(x, raw_conv, fc_params)
    rel = float(jnp.linalg.norm(out - ref) / (jnp.linalg.norm(ref) + 1e-6))
    assert rel < 0.1, f"relative error vs reference too large: {rel}"

    print("KERNEL_OK")
</pallas_src>

<mosaic_0001>
module attributes {stable_mosaic.version = 11 : i64} {
  func.func @_fused_conv_kernel(%arg0: i32, %arg1: i32, %arg2: memref<1x13x8x128xf32, #tpu.memory_space<vmem>>, %arg3: memref<6x128x32xf32, #tpu.memory_space<vmem>>, %arg4: memref<1x32xf32, #tpu.memory_space<vmem>>, %arg5: memref<1x64x32xf32, #tpu.memory_space<vmem>>) attributes {dimension_semantics = [#tpu.dimension_semantics<parallel>, #tpu.dimension_semantics<parallel>], iteration_bounds = array<i64: 2, 1>, scalar_prefetch = 0 : i64, scratch_operands = 0 : i64, tpu.core_type = #tpu.core_type<tc>, window_params = [{transform_indices = @transform_0, window_bounds = array<i64: 1, 13, 8, 128>}, {pipeline_mode = #tpu.pipeline_mode<synchronous>, transform_indices = @transform_1, window_bounds = array<i64: 6, 128, 32>}, {pipeline_mode = #tpu.pipeline_mode<synchronous>, transform_indices = @transform_2, window_bounds = array<i64: 1, 32>}, {transform_indices = @transform_3, window_bounds = array<i64: 1, 64, 32>}]} {
    %c8_i32 = arith.constant 8 : i32
    %0 = arith.muli %arg1, %c8_i32 : i32
    %c0_i32 = arith.constant 0 : i32
    %1 = arith.addi %0, %c0_i32 : i32
    %cst = arith.constant 0.000000e+00 : f32
    %2 = vector.broadcast %cst : f32 to vector<64x32xf32>
    %c0_i32_0 = arith.constant 0 : i32
    %3 = arith.addi %1, %c0_i32_0 : i32
    %c0 = arith.constant 0 : index
    %4 = arith.index_cast %3 : i32 to index
    %c0_1 = arith.constant 0 : index
    %c0_2 = arith.constant 0 : index
    %5 = vector.load %arg2[%c0, %4, %c0_1, %c0_2] : memref<1x13x8x128xf32, #tpu.memory_space<vmem>>, vector<1x8x8x128xf32>
    %6 = vector.shape_cast %5 : vector<1x8x8x128xf32> to vector<8x8x128xf32>
    %7 = vector.shape_cast %6 : vector<8x8x128xf32> to vector<64x128xf32>
    %c0_3 = arith.constant 0 : index
    %c0_4 = arith.constant 0 : index
    %c0_5 = arith.constant 0 : index
    %8 = vector.load %arg3[%c0_3, %c0_4, %c0_5] : memref<6x128x32xf32, #tpu.memory_space<vmem>>, vector<1x128x32xf32>
    %9 = vector.shape_cast %8 : vector<1x128x32xf32> to vector<128x32xf32>
    %cst_6 = arith.constant dense<0.000000e+00> : vector<64x32xf32>
    %10 = tpu.matmul %7, %9, %cst_6 {dimension_numbers = #tpu.dot_dimension_numbers<[1], [0], [0], [1], [0, 0, 1, 1], [], []>} : vector<64x128xf32>, vector<128x32xf32>, vector<64x32xf32> -> vector<64x32xf32>
    %11 = arith.addf %2, %10 : vector<64x32xf32>
    %c1_i32 = arith.constant 1 : i32
    %12 = arith.addi %1, %c1_i32 : i32
    %c0_7 = arith.constant 0 : index
    %13 = arith.index_cast %12 : i32 to index
    %c0_8 = arith.constant 0 : index
    %c0_9 = arith.constant 0 : index
    %14 = vector.load %arg2[%c0_7, %13, %c0_8, %c0_9] : memref<1x13x8x128xf32, #tpu.memory_space<vmem>>, vector<1x8x8x128xf32>
    %15 = vector.shape_cast %14 : vector<1x8x8x128xf32> to vector<8x8x128xf32>
    %16 = vector.shape_cast %15 : vector<8x8x128xf32> to vector<64x128xf32>
    %c1 = arith.constant 1 : index
    %c0_10 = arith.constant 0 : index
    %c0_11 = arith.constant 0 : index
    %17 = vector.load %arg3[%c1, %c0_10, %c0_11] : memref<6x128x32xf32, #tpu.memory_space<vmem>>, vector<1x128x32xf32>
    %18 = vector.shape_cast %17 : vector<1x128x32xf32> to vector<128x32xf32>
    %cst_12 = arith.constant dense<0.000000e+00> : vector<64x32xf32>
    %19 = tpu.matmul %16, %18, %cst_12 {dimension_numbers = #tpu.dot_dimension_numbers<[1], [0], [0], [1], [0, 0, 1, 1], [], []>} : vector<64x128xf32>, vector<128x32xf32>, vector<64x32xf32> -> vector<64x32xf32>
    %20 = arith.addf %11, %19 : vector<64x32xf32>
    %c2_i32 = arith.constant 2 : i32
    %21 = arith.addi %1, %c2_i32 : i32
    %c0_13 = arith.constant 0 : index
    %22 = arith.index_cast %21 : i32 to index
    %c0_14 = arith.constant 0 : index
    %c0_15 = arith.constant 0 : index
    %23 = vector.load %arg2[%c0_13, %22, %c0_14, %c0_15] : memref<1x13x8x128xf32, #tpu.memory_space<vmem>>, vector<1x8x8x128xf32>
    %24 = vector.shape_cast %23 : vector<1x8x8x128xf32> to vector<8x8x128xf32>
    %25 = vector.shape_cast %24 : vector<8x8x128xf32> to vector<64x128xf32>
    %c2 = arith.constant 2 : index
    %c0_16 = arith.constant 0 : index
    %c0_17 = arith.constant 0 : index
    %26 = vector.load %arg3[%c2, %c0_16, %c0_17] : memref<6x128x32xf32, #tpu.memory_space<vmem>>, vector<1x128x32xf32>
    %27 = vector.shape_cast %26 : vector<1x128x32xf32> to vector<128x32xf32>
    %cst_18 = arith.constant dense<0.000000e+00> : vector<64x32xf32>
    %28 = tpu.matmul %25, %27, %cst_18 {dimension_numbers = #tpu.dot_dimension_numbers<[1], [0], [0], [1], [0, 0, 1, 1], [], []>} : vector<64x128xf32>, vector<128x32xf32>, vector<64x32xf32> -> vector<64x32xf32>
    %29 = arith.addf %20, %28 : vector<64x32xf32>
    %c3_i32 = arith.constant 3 : i32
    %30 = arith.addi %1, %c3_i32 : i32
    %c0_19 = arith.constant 0 : index
    %31 = arith.index_cast %30 : i32 to index
    %c0_20 = arith.constant 0 : index
    %c0_21 = arith.constant 0 : index
    %32 = vector.load %arg2[%c0_19, %31, %c0_20, %c0_21] : memref<1x13x8x128xf32, #tpu.memory_space<vmem>>, vector<1x8x8x128xf32>
    %33 = vector.shape_cast %32 : vector<1x8x8x128xf32> to vector<8x8x128xf32>
    %34 = vector.shape_cast %33 : vector<8x8x128xf32> to vector<64x128xf32>
    %c3 = arith.constant 3 : index
    %c0_22 = arith.constant 0 : index
    %c0_23 = arith.constant 0 : index
    %35 = vector.load %arg3[%c3, %c0_22, %c0_23] : memref<6x128x32xf32, #tpu.memory_space<vmem>>, vector<1x128x32xf32>
    %36 = vector.shape_cast %35 : vector<1x128x32xf32> to vector<128x32xf32>
    %cst_24 = arith.constant dense<0.000000e+00> : vector<64x32xf32>
    %37 = tpu.matmul %34, %36, %cst_24 {dimension_numbers = #tpu.dot_dimension_numbers<[1], [0], [0], [1], [0, 0, 1, 1], [], []>} : vector<64x128xf32>, vector<128x32xf32>, vector<64x32xf32> -> vector<64x32xf32>
    %38 = arith.addf %29, %37 : vector<64x32xf32>
    %c4_i32 = arith.constant 4 : i32
    %39 = arith.addi %1, %c4_i32 : i32
    %c0_25 = arith.constant 0 : index
    %40 = arith.index_cast %39 : i32 to index
    %c0_26 = arith.constant 0 : index
    %c0_27 = arith.constant 0 : index
    %41 = vector.load %arg2[%c0_25, %40, %c0_26, %c0_27] : memref<1x13x8x128xf32, #tpu.memory_space<vmem>>, vector<1x8x8x128xf32>
    %42 = vector.shape_cast %41 : vector<1x8x8x128xf32> to vector<8x8x128xf32>
    %43 = vector.shape_cast %42 : vector<8x8x128xf32> to vector<64x128xf32>
    %c4 = arith.constant 4 : index
    %c0_28 = arith.constant 0 : index
    %c0_29 = arith.constant 0 : index
    %44 = vector.load %arg3[%c4, %c0_28, %c0_29] : memref<6x128x32xf32, #tpu.memory_space<vmem>>, vector<1x128x32xf32>
    %45 = vector.shape_cast %44 : vector<1x128x32xf32> to vector<128x32xf32>
    %cst_30 = arith.constant dense<0.000000e+00> : vector<64x32xf32>
    %46 = tpu.matmul %43, %45, %cst_30 {dimension_numbers = #tpu.dot_dimension_numbers<[1], [0], [0], [1], [0, 0, 1, 1], [], []>} : vector<64x128xf32>, vector<128x32xf32>, vector<64x32xf32> -> vector<64x32xf32>
    %47 = arith.addf %38, %46 : vector<64x32xf32>
    %c5_i32 = arith.constant 5 : i32
    %48 = arith.addi %1, %c5_i32 : i32
    %c0_31 = arith.constant 0 : index
    %49 = arith.index_cast %48 : i32 to index
    %c0_32 = arith.constant 0 : index
    %c0_33 = arith.constant 0 : index
    %50 = vector.load %arg2[%c0_31, %49, %c0_32, %c0_33] : memref<1x13x8x128xf32, #tpu.memory_space<vmem>>, vector<1x8x8x128xf32>
    %51 = vector.shape_cast %50 : vector<1x8x8x128xf32> to vector<8x8x128xf32>
    %52 = vector.shape_cast %51 : vector<8x8x128xf32> to vector<64x128xf32>
    %c5 = arith.constant 5 : index
    %c0_34 = arith.constant 0 : index
    %c0_35 = arith.constant 0 : index
    %53 = vector.load %arg3[%c5, %c0_34, %c0_35] : memref<6x128x32xf32, #tpu.memory_space<vmem>>, vector<1x128x32xf32>
    %54 = vector.shape_cast %53 : vector<1x128x32xf32> to vector<128x32xf32>
    %cst_36 = arith.constant dense<0.000000e+00> : vector<64x32xf32>
    %55 = tpu.matmul %52, %54, %cst_36 {dimension_numbers = #tpu.dot_dimension_numbers<[1], [0], [0], [1], [0, 0, 1, 1], [], []>} : vector<64x128xf32>, vector<128x32xf32>, vector<64x32xf32> -> vector<64x32xf32>
    %56 = arith.addf %47, %55 : vector<64x32xf32>
    %c0_37 = arith.constant 0 : index
    %c0_38 = arith.constant 0 : index
    %57 = vector.load %arg4[%c0_37, %c0_38] : memref<1x32xf32, #tpu.memory_space<vmem>>, vector<1x32xf32>
    %58 = vector.broadcast %57 : vector<1x32xf32> to vector<64x32xf32>
    %59 = arith.addf %56, %58 : vector<64x32xf32>
    %cst_39 = arith.constant 0.000000e+00 : f32
    %60 = vector.broadcast %cst_39 : f32 to vector<64x32xf32>
    %61 = arith.cmpf oge, %59, %60 : vector<64x32xf32>
    %cst_40 = arith.constant 2.000000e-01 : f32
    %62 = vector.broadcast %cst_40 : f32 to vector<64x32xf32>
    %63 = arith.mulf %62, %59 : vector<64x32xf32>
    %64 = arith.select %61, %59, %63 : vector<64x32xi1>, vector<64x32xf32>
    %c0_41 = arith.constant 0 : index
    %c0_42 = arith.constant 0 : index
    %c0_43 = arith.constant 0 : index
    %65 = vector.load %arg5[%c0_41, %c0_42, %c0_43] : memref<1x64x32xf32, #tpu.memory_space<vmem>>, vector<1x64x32xf32>
    %66 = vector.shape_cast %65 : vector<1x64x32xf32> to vector<64x32xf32>
    %67 = vector.shape_cast %64 : vector<64x32xf32> to vector<1x64x32xf32>
    tpu.vector_store %arg5[%c0_41, %c0_42, %c0_43], %67 {strides = array<i32>} : memref<1x64x32xf32, #tpu.memory_space<vmem>>, vector<1x64x32xf32>,
    return
  }
  func.func @transform_0(%arg0: i32, %arg1: i32) -> (i32, i32, i32, i32) {
    %c0_i32 = arith.constant 0 : i32
    %c0_i32_0 = arith.constant 0 : i32
    %c0_i32_1 = arith.constant 0 : i32
    %c0_i32_2 = arith.constant 0 : i32
    return %arg0, %c0_i32, %c0_i32_0, %c0_i32_1 : i32, i32, i32, i32
  }
  func.func @transform_1(%arg0: i32, %arg1: i32) -> (i32, i32, i32) {
    %c0_i32 = arith.constant 0 : i32
    %c0_i32_0 = arith.constant 0 : i32
    %c0_i32_1 = arith.constant 0 : i32
    %c0_i32_2 = arith.constant 0 : i32
    return %c0_i32, %c0_i32_0, %c0_i32_1 : i32, i32, i32
  }
  func.func @transform_2(%arg0: i32, %arg1: i32) -> (i32, i32) {
    %c0_i32 = arith.constant 0 : i32
    %c0_i32_0 = arith.constant 0 : i32
    %c0_i32_1 = arith.constant 0 : i32
    return %c0_i32, %c0_i32_0 : i32, i32
  }
  func.func @transform_3(%arg0: i32, %arg1: i32) -> (i32, i32, i32) {
    %c0_i32 = arith.constant 0 : i32
    %c0_i32_0 = arith.constant 0 : i32
    return %arg0, %arg1, %c0_i32 : i32, i32, i32
  }
}

</mosaic_0001>

<llo_original>
// kernel: tpu_custom_call.1
$region0: #{tpu_custom_call.1}
  #allocation0 [shape = 'u32[]', space=smem, size = 0x4, offset = 0x4, fixed_abs, tag = 'smem constant byte address 0x4 - core index']
  #allocation1 [shape = 'u32[144,128]{1,0:T(1,128)}', space=vmem, size = 0x12000, scoped, tag = 'internal scratch']
  %s0 = inlined_call_operand.vmem [shape: f32[2,13,8,128], index: 0, kind: input, shape index: {}]
  %s1 = inlined_call_operand.vmem [shape: f32[6,128,32], index: 1, kind: input, shape index: {}]
  %s2 = inlined_call_operand.vmem [shape: f32[1,32], index: 2, kind: input, shape index: {}]
  %s3 = inlined_call_operand.vmem [shape: f32[2,64,32], index: 3, kind: output, shape index: {}]
  %s4 = sld [smem:[#allocation0]]
  $region45: #{tpu_custom_call.1} parent=0
    _
  %s6 = ssub.s32 1, %s4
  %s7 = scalar_select 0, %s6, %s4
  loop: start=0, step=1, limit=4
  $region2: #{tpu_custom_call.1} parent=0 // loop_pre_header
    _
  $region3: #{tpu_custom_call.1} parent=0 // loop_header
    %s9 = sphi 0, %s13
    %p10 = scmp.ge.s32.totalorder %s9, 4
    %s16 = sphi 0, %s28
    %s17 = sphi 0, %s24
    %s18 = sphi 0, %s16
    %s19 = sphi 0, %s17
    %s20 = sphi 0, %s18
    %s21 = sphi 0, %s19
    %s31 = sphi 0, %s33
    %s34 = sphi 0, %s31
    %s35 = sphi 0, %s34
    %s51 = sphi 0, %s35
    %s55 = sphi 0, %s55
    %s57 = sphi 0, %s55
    %s58 = sphi 0, %s57
    %s72 = sphi 0, %s58
    %s76 = sphi 0, %s76
    %s78 = sphi 0, %s76
    %s79 = sphi 0, %s78
    %s93 = sphi 0, %s79
    %s101 = sphi 0, %s103
    %s104 = sphi 0, %s101
    %s105 = sphi 0, %s104
    %s121 = sphi 0, %s105
  $region4: #{tpu_custom_call.1} parent=0 // loop_header_branch
    %12 = sbr.rel (%p10) target = $region8
  $region5: #{tpu_custom_call.1} parent=0 // loop_body
    %s14 = ssub.s32 %s9, 1
    %s15 = ssub.s32 %s9, 2
    %s22 = sadd.s32 1, %s17
    %p23 = scmp.ge.s32.totalorder %s22, 1
    %s24 = scalar_select %p23, 0, %s22
    %s25 = sadd.s32 1, %s16
    %s26 = scalar_select %p23, %s25, %s16
    %p27 = scmp.ge.s32.totalorder %s26, 2
    %s28 = scalar_select %p27, 0, %s26
    %s29 = ssub.s32 %s16, %s28
    %p30 = scmp.eq.s32.totalorder %s29, 0
    %s32 = sadd.s32 %s31, 1
    %s33 = scalar_select %p30, %s31, %s32
    %p36 = pneg %p30
    %p37 = scmp.eq.s32.totalorder %s9, 1
    %p38 = por %p36, %p37
    %p39 = scmp.ne.s32.totalorder %s31, %s34
    %p40 = scmp.eq.s32.totalorder %s9, 0
    %p41 = por %p39, %p40
    %p42 = scmp.ne.s32.totalorder %s31, %s34
    %p43 = scmp.eq.s32.totalorder %s14, 1
    %p44 = por %p42, %p43
    %p45 = scmp.ne.s32.totalorder %s34, %s35
    %p46 = scmp.eq.s32.totalorder %s14, 0
    %p47 = por %p45, %p46
    %p48 = scmp.ne.s32.totalorder %s34, %s35
    %p49 = scmp.eq.s32.totalorder %s15, 1
    %p50 = por %p48, %p49
    %p52 = scmp.ne.s32.totalorder %s35, %s51
    %p53 = scmp.eq.s32.totalorder %s15, 0
    %p54 = por %p52, %p53
    %s56 = sadd.s32 %s55, 1
    %p59 = scmp.eq.s32.totalorder %s9, 1
    %p60 = scmp.ne.s32.totalorder %s55, %s57
    %p61 = scmp.eq.s32.totalorder %s9, 0
    %p62 = por %p60, %p61
    %p63 = scmp.ne.s32.totalorder %s55, %s57
    %p64 = scmp.eq.s32.totalorder %s14, 1
    %p65 = por %p63, %p64
    %p66 = scmp.ne.s32.totalorder %s57, %s58
    %p67 = scmp.eq.s32.totalorder %s14, 0
    %p68 = por %p66, %p67
    %p69 = scmp.ne.s32.totalorder %s57, %s58
    %p70 = scmp.eq.s32.totalorder %s15, 1
    %p71 = por %p69, %p70
    %p73 = scmp.ne.s32.totalorder %s58, %s72
    %p74 = scmp.eq.s32.totalorder %s15, 0
    %p75 = por %p73, %p74
    %s77 = sadd.s32 %s76, 1
    %p80 = scmp.eq.s32.totalorder %s9, 1
    %p81 = scmp.ne.s32.totalorder %s76, %s78
    %p82 = scmp.eq.s32.totalorder %s9, 0
    %p83 = por %p81, %p82
    %p84 = scmp.ne.s32.totalorder %s76, %s78
    %p85 = scmp.eq.s32.totalorder %s14, 1
    %p86 = por %p84, %p85
    %p87 = scmp.ne.s32.totalorder %s78, %s79
    %p88 = scmp.eq.s32.totalorder %s14, 0
    %p89 = por %p87, %p88
    %p90 = scmp.ne.s32.totalorder %s78, %s79
    %p91 = scmp.eq.s32.totalorder %s15, 1
    %p92 = por %p90, %p91
    %p94 = scmp.ne.s32.totalorder %s79, %s93
    %p95 = scmp.eq.s32.totalorder %s15, 0
    %p96 = por %p94, %p95
    %s97 = ssub.s32 %s16, %s28
    %s98 = ssub.s32 %s17, %s24
    %s99 = sor.u32 %s97, %s98
    %p100 = scmp.eq.s32.totalorder %s99, 0
    %s102 = sadd.s32 %s101, 1
    %s103 = scalar_select %p100, %s101, %s102
    %p106 = pneg %p100
    %p107 = scmp.eq.s32.totalorder %s9, 1
    %p108 = por %p106, %p107
    %p109 = scmp.ne.s32.totalorder %s101, %s104
    %p110 = scmp.eq.s32.totalorder %s9, 0
    %p111 = por %p109, %p110
    %p112 = scmp.ne.s32.totalorder %s101, %s104
    %p113 = scmp.eq.s32.totalorder %s14, 1
    %p114 = por %p112, %p113
    %p115 = scmp.ne.s32.totalorder %s104, %s105
    %p116 = scmp.eq.s32.totalorder %s14, 0
    %p117 = por %p115, %p116
    %p118 = scmp.ne.s32.totalorder %s104, %s105
    %p119 = scmp.eq.s32.totalorder %s15, 1
    %p120 = por %p118, %p119
    %p122 = scmp.ne.s32.totalorder %s105, %s121
    %p123 = scmp.eq.s32.totalorder %s15, 0
    %p124 = por %p122, %p123
    %p125 = scmp.le.s32.totalorder 1, %s9
    %p126 = scmp.lt.s32.totalorder %s9, 3
    %p127 = pnand %p125, %p126
    %p128 = pneg %p127
    // Predicated region
    $region9: #{tpu_custom_call.1} parent=5 // pred_check
      _
    $region10: #{tpu_custom_call.1} parent=5 // pred_check_branch
      %130 = sbr.rel (%p127) target = $region12
    $region11: #{tpu_custom_call.1} parent=5 // pred_region
      %s131 = ssub.s32 %s9, 1
      // Predicated region
      $region13: #{tpu_custom_call.1} parent=11 // pred_check
        %p132 = pneg %p68
      $region14: #{tpu_custom_call.1} parent=11 // pred_check_branch
        %134 = sbr.rel (%p132) target = $region16
      $region15: #{tpu_custom_call.1} parent=11 // pred_region
        _
      $region16: #{tpu_custom_call.1} parent=11 // pred_fallthru
        _
      // Predicated region
      $region17: #{tpu_custom_call.1} parent=11 // pred_check
        %p135 = pneg %p89
      $region18: #{tpu_custom_call.1} parent=11 // pred_check_branch
        %137 = sbr.rel (%p135) target = $region20
      $region19: #{tpu_custom_call.1} parent=11 // pred_region
        _
      $region20: #{tpu_custom_call.1} parent=11 // pred_fallthru
        _
    $region12: #{tpu_custom_call.1} parent=5 // pred_fallthru
      _
    %p138 = scmp.lt.s32.totalorder %s9, 2
    // Predicated region
    $region21: #{tpu_custom_call.1} parent=5 // pred_check
      %p139 = pneg %p138
    $region22: #{tpu_custom_call.1} parent=5 // pred_check_branch
      %141 = sbr.rel (%p139) target = $region24
    $region23: #{tpu_custom_call.1} parent=5 // pred_region
      // Predicated region
      $region25: #{tpu_custom_call.1} parent=23 // pred_check
        %p142 = pneg %p41
      $region26: #{tpu_custom_call.1} parent=23 // pred_check_branch
        %144 = sbr.rel (%p142) target = $region28
      $region27: #{tpu_custom_call.1} parent=23 // pred_region
        %p145 = scmp.lt.s32.totalorder %s16, 1
        %s146 = scalar_select %p145, %s16, 1
        %s147 = smul.addr %s146, 13
        %s148 = smul.addr %s147, 8
        %s149 = scalar_lea.vmem %s0, %s148
      $region28: #{tpu_custom_call.1} parent=23 // pred_fallthru
        _
    $region24: #{tpu_custom_call.1} parent=5 // pred_fallthru
      _
    %p150 = scmp.le.s32.totalorder 1, %s9
    %p151 = scmp.lt.s32.totalorder %s9, 3
    %p152 = pnand %p150, %p151
    %p153 = pneg %p152
    // Predicated region
    $region29: #{tpu_custom_call.1} parent=5 // pred_check
      _
    $region30: #{tpu_custom_call.1} parent=5 // pred_check_branch
      %155 = sbr.rel (%p152) target = $region32
    $region31: #{tpu_custom_call.1} parent=5 // pred_region
      %s156 = ssub.s32 %s9, 1
      %p157 = scmp.lt.s32.totalorder %s18, 1
      %s158 = scalar_select %p157, %s18, 1
      %s159 = smul.addr %s158, 13
      %s160 = smul.addr %s159, 8
      %s161 = scalar_lea.vmem %s0, %s160
      %p162 = pneg %p47
      %p163 = pneg %p44
      %p164 = pneg %p68
      %p165 = pneg %p65
      %p166 = pneg %p89
      %p167 = pneg %p86
      %p168 = pneg %p117
      %p169 = pneg %p114
      %s170 = smul.u32 8, %s19
      %p171 = scmp.lt.s32.totalorder %s18, 1
      %s172 = scalar_select %p171, %s18, 1
      %p173 = scmp.lt.s32.totalorder %s170, 7
      %s174 = scalar_select %p173, %s170, 7
      %s175 = smul.addr %s172, 8
      %s176 = sadd.s32 %s174, %s175
      %s177 = smul.addr %s176, 8
      %s178 = scalar_lea.vmem %s3, %s177
      %p179 = scmp.lt.s32.totalorder %s18, 1
      %s180 = scalar_select %p179, %s18, 1
      %s181 = smul.addr %s180, 13
      %s182 = smul.addr %s181, 8
      %s183 = scalar_lea.vmem %s0, %s182
      %s184 = smul.u32 8, %s19
      %p185 = scmp.lt.s32.totalorder %s18, 1
      %s186 = scalar_select %p185, %s18, 1
      %p187 = scmp.lt.s32.totalorder %s184, 7
      %s188 = scalar_select %p187, %s184, 7
      %s189 = smul.addr %s186, 8
      %s190 = sadd.s32 %s188, %s189
      %s191 = smul.addr %s190, 8
      %s192 = scalar_lea.vmem %s3, %s191
      %s193 = smul.u32 8, %s19
      %s194 = smul.u32 %s19, 8
      %s195 = smul.u32 %s194, 8
      %s196 = scalar_lea.vmem %s183, %s195
      %v197 = vld [vmem:[%s196] sm:$0xff]
      %v198 = vld [vmem:[%s196 + $0x8] sm:$0xff]
      %v199 = vld [vmem:[%s196 + $0x10] sm:$0xff]
      %v200 = vld [vmem:[%s196 + $0x18] sm:$0xff]
      %v201 = vld [vmem:[%s196 + $0x20] sm:$0xff]
      %v202 = vld [vmem:[%s196 + $0x28] sm:$0xff]
      %v203 = vld [vmem:[%s196 + $0x30] sm:$0xff]
      %v204 = vld [vmem:[%s196 + $0x38] sm:$0xff]
      %v205 = vld [vmem:[%s1] sm:$0xff]
      %v206 = vld [vmem:[%s1 + $0x8] sm:$0xff]
      %v207 = vld [vmem:[%s1 + $0x10] sm:$0xff]
      %v208 = vld [vmem:[%s1 + $0x18] sm:$0xff]
      %v209 = vld [vmem:[%s1 + $0x20] sm:$0xff]
      %v210 = vld [vmem:[%s1 + $0x28] sm:$0xff]
      %v211 = vld [vmem:[%s1 + $0x30] sm:$0xff]
      %v212 = vld [vmem:[%s1 + $0x38] sm:$0xff]
      %v213 = vld [vmem:[%s1 + $0x40] sm:$0xff]
      %v214 = vld [vmem:[%s1 + $0x48] sm:$0xff]
      %v215 = vld [vmem:[%s1 + $0x50] sm:$0xff]
      %v216 = vld [vmem:[%s1 + $0x58] sm:$0xff]
      %v217 = vld [vmem:[%s1 + $0x60] sm:$0xff]
      %v218 = vld [vmem:[%s1 + $0x68] sm:$0xff]
      %v219 = vld [vmem:[%s1 + $0x70] sm:$0xff]
      %v220 = vld [vmem:[%s1 + $0x78] sm:$0xff]
      %s221 = sadd.s32 %s194, 1
      %s222 = smul.u32 %s221, 8
      %s223 = scalar_lea.vmem %s183, %s222
      %v224 = vld [vmem:[%s223] sm:$0xff]
      %v225 = vld [vmem:[%s223 + $0x8] sm:$0xff]
      %v226 = vld [vmem:[%s223 + $0x10] sm:$0xff]
      %v227 = vld [vmem:[%s223 + $0x18] sm:$0xff]
      %v228 = vld [vmem:[%s223 + $0x20] sm:$0xff]
      %v229 = vld [vmem:[%s223 + $0x28] sm:$0xff]
      %v230 = vld [vmem:[%s223 + $0x30] sm:$0xff]
      %v231 = vld [vmem:[%s223 + $0x38] sm:$0xff]
      %s232 = scalar_lea.vmem %s1, 128
      %v233 = vld [vmem:[%s232] sm:$0xff]
      %v234 = vld [vmem:[%s232 + $0x8] sm:$0xff]
      %v235 = vld [vmem:[%s232 + $0x10] sm:$0xff]
      %v236 = vld [vmem:[%s232 + $0x18] sm:$0xff]
      %v237 = vld [vmem:[%s232 + $0x20] sm:$0xff]
      %v238 = vld [vmem:[%s232 + $0x28] sm:$0xff]
      %v239 = vld [vmem:[%s232 + $0x30] sm:$0xff]
      %v240 = vld [vmem:[%s232 + $0x38] sm:$0xff]
      %v241 = vld [vmem:[%s232 + $0x40] sm:$0xff]
      %v242 = vld [vmem:[%s232 + $0x48] sm:$0xff]
      %v243 = vld [vmem:[%s232 + $0x50] sm:$0xff]
      %v244 = vld [vmem:[%s232 + $0x58] sm:$0xff]
      %v245 = vld [vmem:[%s232 + $0x60] sm:$0xff]
      %v246 = vld [vmem:[%s232 + $0x68] sm:$0xff]
      %v247 = vld [vmem:[%s232 + $0x70] sm:$0xff]
      %v248 = vld [vmem:[%s232 + $0x78] sm:$0xff]
      %249 = vmatprep.subr.mxu0 0.0
      %250 = vmatpush1.msra.mxu0 %v233
      %251 = vmatprep.subr.mxu0 0.0
      %252 = vmatpush1.msra.mxu0 %v234
      %253 = vmatprep.subr.mxu0 0.0
      %254 = vmatpush1.msra.mxu0 %v235
      %255 = vmatprep.subr.mxu0 0.0
      %256 = vmatpush1.msra.mxu0 %v236
      %257 = vmatprep.subr.mxu0 0.0
      %258 = vmatpush1.msra.mxu0 %v237
      %259 = vmatprep.subr.mxu0 0.0
      %260 = vmatpush1.msra.mxu0 %v238
      %261 = vmatprep.subr.mxu0 0.0
      %262 = vmatpush1.msra.mxu0 %v239
      %263 = vmatprep.subr.mxu0 0.0
      %264 = vmatpush1.msra.mxu0 %v240
      %265 = vmatprep.subr.mxu0 0.0
      %266 = vmatpush1.msra.mxu0 %v241
      %267 = vmatprep.subr.mxu0 0.0
      %268 = vmatpush1.msra.mxu0 %v242
      %269 = vmatprep.subr.mxu0 0.0
      %270 = vmatpush1.msra.mxu0 %v243
      %271 = vmatprep.subr.mxu0 0.0
      %272 = vmatpush1.msra.mxu0 %v244
      %273 = vmatprep.subr.mxu0 0.0
      %274 = vmatpush1.msra.mxu0 %v245
      %275 = vmatprep.subr.mxu0 0.0
      %276 = vmatpush1.msra.mxu0 %v246
      %277 = vmatprep.subr.mxu0 0.0
      %278 = vmatpush1.msra.mxu0 %v247
      %279 = vmatprep.subr.mxu0 0.0
      %280 = vmatpush1.msra.mxu0 %v248
      %281 = vmatprep.subr.mxu0 0.0
      %282 = vmatpush1.msra.mxu0 0.0
      %283 = vmatprep.subr.mxu0 0.0
      %284 = vmatpush1.msra.mxu0 0.0
      %285 = vmatprep.subr.mxu0 0.0
      %286 = vmatpush1.msra.mxu0 0.0
      %287 = vmatprep.subr.mxu0 0.0
      %288 = vmatpush1.msra.mxu0 0.0
      %289 = vmatprep.subr.mxu0 0.0
      %290 = vmatpush1.msra.mxu0 0.0
      %291 = vmatprep.subr.mxu0 0.0
      %292 = vmatpush1.msra.mxu0 0.0
      %293 = vmatprep.subr.mxu0 0.0
      %294 = vmatpush1.msra.mxu0 0.0
      %295 = vmatprep.subr.mxu0 0.0
      %296 = vmatpush1.msra.mxu0 0.0
      %297 = vmatprep.subr.mxu0 0.0
      %298 = vmatpush1.msra.mxu0 0.0
      %299 = vmatprep.subr.mxu0 0.0
      %300 = vmatpush1.msra.mxu0 0.0
      %301 = vmatprep.subr.mxu0 0.0
      %302 = vmatpush1.msra.mxu0 0.0
      %303 = vmatprep.subr.mxu0 0.0
      %304 = vmatpush1.msra.mxu0 0.0
      %305 = vmatprep.subr.mxu0 0.0
      %306 = vmatpush1.msra.mxu0 0.0
      %307 = vmatprep.subr.mxu0 0.0
      %308 = vmatpush1.msra.mxu0 0.0
      %309 = vmatprep.subr.mxu0 0.0
      %310 = vmatpush1.msra.mxu0 0.0
      %311 = vmatprep.subr.mxu0 0.0
      %312 = vmatpush1.msra.mxu0 0.0
      %313 = vmatprep.mubr.f32.mxu0 0.0
      %314 = vmatmul.mubr.f32.gmra.mrb[0].mxu0 %v224
      %v315 = vpop.f32.mrb[0].mxu0
      %v316 = vadd.f32 0.0, %v315
      %v317 = vpop.f32.mrb[0].mxu0
      %318 = vmatprep.mubr.f32.mxu0 0.0
      %319 = vmatmul.mubr.f32.gmra.mrb[0].mxu0 %v225
      %v320 = vpop.f32.mrb[0].mxu0
      %v321 = vadd.f32 0.0, %v320
      %v322 = vpop.f32.mrb[0].mxu0
      %323 = vmatprep.mubr.f32.mxu0 0.0
      %324 = vmatmul.mubr.f32.gmra.mrb[0].mxu0 %v226
      %v325 = vpop.f32.mrb[0].mxu0
      %v326 = vadd.f32 0.0, %v325
      %v327 = vpop.f32.mrb[0].mxu0
      %328 = vmatprep.mubr.f32.mxu0 0.0
      %329 = vmatmul.mubr.f32.gmra.mrb[0].mxu0 %v227
      %v330 = vpop.f32.mrb[0].mxu0
      %v331 = vadd.f32 0.0, %v330
      %v332 = vpop.f32.mrb[0].mxu0
      %333 = vmatprep.mubr.f32.mxu0 0.0
      %334 = vmatmul.mubr.f32.gmra.mrb[0].mxu0 %v228
      %v335 = vpop.f32.mrb[0].mxu0
      %v336 = vadd.f32 0.0, %v335
      %v337 = vpop.f32.mrb[0].mxu0
      %338 = vmatprep.mubr.f32.mxu0 0.0
      %339 = vmatmul.mubr.f32.gmra.mrb[0].mxu0 %v229
      %v340 = vpop.f32.mrb[0].mxu0
      %v341 = vadd.f32 0.0, %v340
      %v342 = vpop.f32.mrb[0].mxu0
      %343 = vmatprep.mubr.f32.mxu0 0.0
      %344 = vmatmul.mubr.f32.gmra.mrb[0].mxu0 %v230
      %v345 = vpop.f32.mrb[0].mxu0
      %v346 = vadd.f32 0.0, %v345
      %v347 = vpop.f32.mrb[0].mxu0
      %348 = vmatprep.mubr.f32.mxu0 0.0
      %349 = vmatmul.mubr.f32.gmra.mrb[0].mxu0 %v231
      %v350 = vpop.f32.mrb[0].mxu0
      %v351 = vadd.f32 0.0, %v350
      %v352 = vpop.f32.mrb[0].mxu0
      %353 = vdwg.mxu0
      %354 = vmatprep.subr.mxu0 0.0
      %355 = vmatpush1.msra.mxu0 %v205
      %356 = vmatprep.subr.mxu0 0.0
      %357 = vmatpush1.msra.mxu0 %v206
      %358 = vmatprep.subr.mxu0 0.0
      %359 = vmatpush1.msra.mxu0 %v207
      %360 = vmatprep.subr.mxu0 0.0
      %361 = vmatpush1.msra.mxu0 %v208
      %362 = vmatprep.subr.mxu0 0.0
      %363 = vmatpush1.msra.mxu0 %v209
      %364 = vmatprep.subr.mxu0 0.0
      %365 = vmatpush1.msra.mxu0 %v210
      %366 = vmatprep.subr.mxu0 0.0
      %367 = vmatpush1.msra.mxu0 %v211
      %368 = vmatprep.subr.mxu0 0.0
      %369 = vmatpush1.msra.mxu0 %v212
      %370 = vmatprep.subr.mxu0 0.0
      %371 = vmatpush1.msra.mxu0 %v213
      %372 = vmatprep.subr.mxu0 0.0
      %373 = vmatpush1.msra.mxu0 %v214
      %374 = vmatprep.subr.mxu0 0.0
      %375 = vmatpush1.msra.mxu0 %v215
      %376 = vmatprep.subr.mxu0 0.0
      %377 = vmatpush1.msra.mxu0 %v216
      %378 = vmatprep.subr.mxu0 0.0
      %379 = vmatpush1.msra.mxu0 %v217
      %380 = vmatprep.subr.mxu0 0.0
      %381 = vmatpush1.msra.mxu0 %v218
      %382 = vmatprep.subr.mxu0 0.0
      %383 = vmatpush1.msra.mxu0 %v219
      %384 = vmatprep.subr.mxu0 0.0
      %385 = vmatpush1.msra.mxu0 %v220
      %386 = vmatprep.subr.mxu0 0.0
      %387 = vmatpush1.msra.mxu0 0.0
      %388 = vmatprep.subr.mxu0 0.0
      %389 = vmatpush1.msra.mxu0 0.0
      %390 = vmatprep.subr.mxu0 0.0
      %391 = vmatpush1.msra.mxu0 0.0
      %392 = vmatprep.subr.mxu0 0.0
      %393 = vmatpush1.msra.mxu0 0.0
      %394 = vmatprep.subr.mxu0 0.0
      %395 = vmatpush1.msra.mxu0 0.0
      %396 = vmatprep.subr.mxu0 0.0
      %397 = vmatpush1.msra.mxu0 0.0
      %398 = vmatprep.subr.mxu0 0.0
      %399 = vmatpush1.msra.mxu0 0.0
      %400 = vmatprep.subr.mxu0 0.0
      %401 = vmatpush1.msra.mxu0 0.0
      %402 = vmatprep.subr.mxu0 0.0
      %403 = vmatpush1.msra.mxu0 0.0
      %404 = vmatprep.subr.mxu0 0.0
      %405 = vmatpush1.msra.mxu0 0.0
      %406 = vmatprep.subr.mxu0 0.0
      %407 = vmatpush1.msra.mxu0 0.0
      %408 = vmatprep.subr.mxu0 0.0
      %409 = vmatpush1.msra.mxu0 0.0
      %410 = vmatprep.subr.mxu0 0.0
      %411 = vmatpush1.msra.mxu0 0.0
      %412 = vmatprep.subr.mxu0 0.0
      %413 = vmatpush1.msra.mxu0 0.0
      %414 = vmatprep.subr.mxu0 0.0
      %415 = vmatpush1.msra.mxu0 0.0
      %416 = vmatprep.subr.mxu0 0.0
      %417 = vmatpush1.msra.mxu0 0.0
      %418 = vmatprep.mubr.f32.mxu0 0.0
      %419 = vmatmul.mubr.f32.gmra.mrb[0].mxu0 %v197
      %v420 = vpop.f32.mrb[0].mxu0
      %v421 = vadd.f32 %v316, %v420
      %v422 = vpop.f32.mrb[0].mxu0
      %423 = vmatprep.mubr.f32.mxu0 0.0
      %424 = vmatmul.mubr.f32.gmra.mrb[0].mxu0 %v198
      %v425 = vpop.f32.mrb[0].mxu0
      %v426 = vadd.f32 %v321, %v425
      %v427 = vpop.f32.mrb[0].mxu0
      %428 = vmatprep.mubr.f32.mxu0 0.0
      %429 = vmatmul.mubr.f32.gmra.mrb[0].mxu0 %v199
      %v430 = vpop.f32.mrb[0].mxu0
      %v431 = vadd.f32 %v326, %v430
      %v432 = vpop.f32.mrb[0].mxu0
      %433 = vmatprep.mubr.f32.mxu0 0.0
      %434 = vmatmul.mubr.f32.gmra.mrb[0].mxu0 %v200
      %v435 = vpop.f32.mrb[0].mxu0
      %v436 = vadd.f32 %v331, %v435
      %v437 = vpop.f32.mrb[0].mxu0
      %438 = vmatprep.mubr.f32.mxu0 0.0
      %439 = vmatmul.mubr.f32.gmra.mrb[0].mxu0 %v201
      %v440 = vpop.f32.mrb[0].mxu0
      %v441 = vadd.f32 %v336, %v440
      %v442 = vpop.f32.mrb[0].mxu0
      %443 = vmatprep.mubr.f32.mxu0 0.0
      %444 = vmatmul.mubr.f32.gmra.mrb[0].mxu0 %v202
      %v445 = vpop.f32.mrb[0].mxu0
      %v446 = vadd.f32 %v341, %v445
      %v447 = vpop.f32.mrb[0].mxu0
      %448 = vmatprep.mubr.f32.mxu0 0.0
      %449 = vmatmul.mubr.f32.gmra.mrb[0].mxu0 %v203
      %v450 = vpop.f32.mrb[0].mxu0
      %v451 = vadd.f32 %v346, %v450
      %v452 = vpop.f32.mrb[0].mxu0
      %453 = vmatprep.mubr.f32.mxu0 0.0
      %454 = vmatmul.mubr.f32.gmra.mrb[0].mxu0 %v204
      %v455 = vpop.f32.mrb[0].mxu0
      %v456 = vadd.f32 %v351, %v455
      %v457 = vpop.f32.mrb[0].mxu0
      %458 = vdwg.mxu0
      %s459 = sadd.s32 %s194, 2
      %s460 = smul.u32 %s459, 8
      %s461 = scalar_lea.vmem %s183, %s460
      %v462 = vld [vmem:[%s461] sm:$0xff]
      %v463 = vld [vmem:[%s461 + $0x8] sm:$0xff]
      %v464 = vld [vmem:[%s461 + $0x10] sm:$0xff]
      %v465 = vld [vmem:[%s461 + $0x18] sm:$0xff]
      %v466 = vld [vmem:[%s461 + $0x20] sm:$0xff]
      %v467 = vld [vmem:[%s461 + $0x28] sm:$0xff]
      %v468 = vld [vmem:[%s461 + $0x30] sm:$0xff]
      %v469 = vld [vmem:[%s461 + $0x38] sm:$0xff]
      %s470 = scalar_lea.vmem %s1, 256
      %v471 = vld [vmem:[%s470] sm:$0xff]
      %v472 = vld [vmem:[%s470 + $0x8] sm:$0xff]
      %v473 = vld [vmem:[%s470 + $0x10] sm:$0xff]
      %v474 = vld [vmem:[%s470 + $0x18] sm:$0xff]
      %v475 = vld [vmem:[%s470 + $0x20] sm:$0xff]
      %v476 = vld [vmem:[%s470 + $0x28] sm:$0xff]
      %v477 = vld [vmem:[%s470 + $0x30] sm:$0xff]
      %v478 = vld [vmem:[%s470 + $0x38] sm:$0xff]
      %v479 = vld [vmem:[%s470 + $0x40] sm:$0xff]
      %v480 = vld [vmem:[%s470 + $0x48] sm:$0xff]
      %v481 = vld [vmem:[%s470 + $0x50] sm:$0xff]
      %v482 = vld [vmem:[%s470 + $0x58] sm:$0xff]
      %v483 = vld [vmem:[%s470 + $0x60] sm:$0xff]
      %v484 = vld [vmem:[%s470 + $0x68] sm:$0xff]
      %v485 = vld [vmem:[%s470 + $0x70] sm:$0xff]
      %v486 = vld [vmem:[%s470 + $0x78] sm:$0xff]
      %487 = vmatprep.subr.mxu0 0.0
      %488 = vmatpush1.msra.mxu0 %v471
      %489 = vmatprep.subr.mxu0 0.0
      %490 = vmatpush1.msra.mxu0 %v472
      %491 = vmatprep.subr.mxu0 0.0
      %492 = vmatpush1.msra.mxu0 %v473
      %493 = vmatprep.subr.mxu0 0.0
      %494 = vmatpush1.msra.mxu0 %v474
      %495 = vmatprep.subr.mxu0 0.0
      %496 = vmatpush1.msra.mxu0 %v475
      %497 = vmatprep.subr.mxu0 0.0
      %498 = vmatpush1.msra.mxu0 %v476
      %499 = vmatprep.subr.mxu0 0.0
      %500 = vmatpush1.msra.mxu0 %v477
      %501 = vmatprep.subr.mxu0 0.0
      %502 = vmatpush1.msra.mxu0 %v478
      %503 = vmatprep.subr.mxu0 0.0
      %504 = vmatpush1.msra.mxu0 %v479
      %505 = vmatprep.subr.mxu0 0.0
      %506 = vmatpush1.msra.mxu0 %v480
      %507 = vmatprep.subr.mxu0 0.0
      %508 = vmatpush1.msra.mxu0 %v481
      %509 = vmatprep.subr.mxu0 0.0
      %510 = vmatpush1.msra.mxu0 %v482
      %511 = vmatprep.subr.mxu0 0.0
      %512 = vmatpush1.msra.mxu0 %v483
      %513 = vmatprep.subr.mxu0 0.0
      %514 = vmatpush1.msra.mxu0 %v484
      %515 = vmatprep.subr.mxu0 0.0
      %516 = vmatpush1.msra.mxu0 %v485
      %517 = vmatprep.subr.mxu0 0.0
      %518 = vmatpush1.msra.mxu0 %v486
      %519 = vmatprep.subr.mxu0 0.0
      %520 = vmatpush1.msra.mxu0 0.0
      %521 = vmatprep.subr.mxu0 0.0
      %522 = vmatpush1.msra.mxu0 0.0
      %523 = vmatprep.subr.mxu0 0.0
      %524 = vmatpush1.msra.mxu0 0.0
      %525 = vmatprep.subr.mxu0 0.0
      %526 = vmatpush1.msra.mxu0 0.0
      %527 = vmatprep.subr.mxu0 0.0
      %528 = vmatpush1.msra.mxu0 0.0
      %529 = vmatprep.subr.mxu0 0.0
      %530 = vmatpush1.msra.mxu0 0.0
      %531 = vmatprep.subr.mxu0 0.0
      %532 = vmatpush1.msra.mxu0 0.0
      %533 = vmatprep.subr.mxu0 0.0
      %534 = vmatpush1.msra.mxu0 0.0
      %535 = vmatprep.subr.mxu0 0.0
      %536 = vmatpush1.msra.mxu0 0.0
      %537 = vmatprep.subr.mxu0 0.0
      %538 = vmatpush1.msra.mxu0 0.0
      %539 = vmatprep.subr.mxu0 0.0
      %540 = vmatpush1.msra.mxu0 0.0
      %541 = vmatprep.subr.mxu0 0.0
      %542 = vmatpush1.msra.mxu0 0.0
      %543 = vmatprep.subr.mxu0 0.0
      %544 = vmatpush1.msra.mxu0 0.0
      %545 = vmatprep.subr.mxu0 0.0
      %546 = vmatpush1.msra.mxu0 0.0
      %547 = vmatprep.subr.mxu0 0.0
      %548 = vmatpush1.msra.mxu0 0.0
      %549 = vmatprep.subr.mxu0 0.0
      %550 = vmatpush1.msra.mxu0 0.0
      %551 = vmatprep.mubr.f32.mxu0 0.0
      %552 = vmatmul.mubr.f32.gmra.mrb[0].mxu0 %v462
      %v553 = vpop.f32.mrb[0].mxu0
      %v554 = vadd.f32 0.0, %v553
      %v555 = vpop.f32.mrb[0].mxu0
      %556 = vmatprep.mubr.f32.mxu0 0.0
      %557 = vmatmul.mubr.f32.gmra.mrb[0].mxu0 %v463
      %v558 = vpop.f32.mrb[0].mxu0
      %v559 = vadd.f32 0.0, %v558
      %v560 = vpop.f32.mrb[0].mxu0
      %561 = vmatprep.mubr.f32.mxu0 0.0
      %562 = vmatmul.mubr.f32.gmra.mrb[0].mxu0 %v464
      %v563 = vpop.f32.mrb[0].mxu0
      %v564 = vadd.f32 0.0, %v563
      %v565 = vpop.f32.mrb[0].mxu0
      %566 = vmatprep.mubr.f32.mxu0 0.0
      %567 = vmatmul.mubr.f32.gmra.mrb[0].mxu0 %v465
      %v568 = vpop.f32.mrb[0].mxu0
      %v569 = vadd.f32 0.0, %v568
      %v570 = vpop.f32.mrb[0].mxu0
      %571 = vmatprep.mubr.f32.mxu0 0.0
      %572 = vmatmul.mubr.f32.gmra.mrb[0].mxu0 %v466
      %v573 = vpop.f32.mrb[0].mxu0
      %v574 = vadd.f32 0.0, %v573
      %v575 = vpop.f32.mrb[0].mxu0
      %576 = vmatprep.mubr.f32.mxu0 0.0
      %577 = vmatmul.mubr.f32.gmra.mrb[0].mxu0 %v467
      %v578 = vpop.f32.mrb[0].mxu0
      %v579 = vadd.f32 0.0, %v578
      %v580 = vpop.f32.mrb[0].mxu0
      %581 = vmatprep.mubr.f32.mxu0 0.0
      %582 = vmatmul.mubr.f32.gmra.mrb[0].mxu0 %v468
      %v583 = vpop.f32.mrb[0].mxu0
      %v584 = vadd.f32 0.0, %v583
      %v585 = vpop.f32.mrb[0].mxu0
      %586 = vmatprep.mubr.f32.mxu0 0.0
      %587 = vmatmul.mubr.f32.gmra.mrb[0].mxu0 %v469
      %v588 = vpop.f32.mrb[0].mxu0
      %v589 = vadd.f32 0.0, %v588
      %v590 = vpop.f32.mrb[0].mxu0
      %591 = vdwg.mxu0
      %v592 = vadd.f32 %v421, %v554
      %v593 = vadd.f32 %v426, %v559
      %v594 = vadd.f32 %v431, %v564
      %v595 = vadd.f32 %v436, %v569
      %v596 = vadd.f32 %v441, %v574
      %v597 = vadd.f32 %v446, %v579
      %v598 = vadd.f32 %v451, %v584
      %v599 = vadd.f32 %v456, %v589
      %s600 = sadd.s32 %s194, 3
      %s601 = smul.u32 %s600, 8
      %s602 = scalar_lea.vmem %s183, %s601
      %v603 = vld [vmem:[%s602] sm:$0xff]
      %v604 = vld [vmem:[%s602 + $0x8] sm:$0xff]
      %v605 = vld [vmem:[%s602 + $0x10] sm:$0xff]
      %v606 = vld [vmem:[%s602 + $0x18] sm:$0xff]
      %v607 = vld [vmem:[%s602 + $0x20] sm:$0xff]
      %v608 = vld [vmem:[%s602 + $0x28] sm:$0xff]
      %v609 = vld [vmem:[%s602 + $0x30] sm:$0xff]
      %v610 = vld [vmem:[%s602 + $0x38] sm:$0xff]
      %s611 = scalar_lea.vmem %s1, 384
      %v612 = vld [vmem:[%s611] sm:$0xff]
      %v613 = vld [vmem:[%s611 + $0x8] sm:$0xff]
      %v614 = vld [vmem:[%s611 + $0x10] sm:$0xff]
      %v615 = vld [vmem:[%s611 + $0x18] sm:$0xff]
      %v616 = vld [vmem:[%s611 + $0x20] sm:$0xff]
      %v617 = vld [vmem:[%s611 + $0x28] sm:$0xff]
      %v618 = vld [vmem:[%s611 + $0x30] sm:$0xff]
      %v619 = vld [vmem:[%s611 + $0x38] sm:$0xff]
      %v620 = vld [vmem:[%s611 + $0x40] sm:$0xff]
      %v621 = vld [vmem:[%s611 + $0x48] sm:$0xff]
      %v622 = vld [vmem:[%s611 + $0x50] sm:$0xff]
      %v623 = vld [vmem:[%s611 + $0x58] sm:$0xff]
      %v624 = vld [vmem:[%s611 + $0x60] sm:$0xff]
      %v625 = vld [vmem:[%s611 + $0x68] sm:$0xff]
      %v626 = vld [vmem:[%s611 + $0x70] sm:$0xff]
      %v627 = vld [vmem:[%s611 + $0x78] sm:$0xff]
      %628 = vmatprep.subr.mxu0 0.0
      %629 = vmatpush1.msra.mxu0 %v612
      %630 = vmatprep.subr.mxu0 0.0
      %631 = vmatpush1.msra.mxu0 %v613
      %632 = vmatprep.subr.mxu0 0.0
      %633 = vmatpush1.msra.mxu0 %v614
      %634 = vmatprep.subr.mxu0 0.0
      %635 = vmatpush1.msra.mxu0 %v615
      %636 = vmatprep.subr.mxu0 0.0
      %637 = vmatpush1.msra.mxu0 %v616
      %638 = vmatprep.subr.mxu0 0.0
      %639 = vmatpush1.msra.mxu0 %v617
      %640 = vmatprep.subr.mxu0 0.0
      %641 = vmatpush1.msra.mxu0 %v618
      %642 = vmatprep.subr.mxu0 0.0
      %643 = vmatpush1.msra.mxu0 %v619
      %644 = vmatprep.subr.mxu0 0.0
      %645 = vmatpush1.msra.mxu0 %v620
      %646 = vmatprep.subr.mxu0 0.0
      %647 = vmatpush1.msra.mxu0 %v621
      %648 = vmatprep.subr.mxu0 0.0
      %649 = vmatpush1.msra.mxu0 %v622
      %650 = vmatprep.subr.mxu0 0.0
      %651 = vmatpush1.msra.mxu0 %v623
      %652 = vmatprep.subr.mxu0 0.0
      %653 = vmatpush1.msra.mxu0 %v624
      %654 = vmatprep.subr.mxu0 0.0
      %655 = vmatpush1.msra.mxu0 %v625
      %656 = vmatprep.subr.mxu0 0.0
      %657 = vmatpush1.msra.mxu0 %v626
      %658 = vmatprep.subr.mxu0 0.0
      %659 = vmatpush1.msra.mxu0 %v627
      %660 = vmatprep.subr.mxu0 0.0
      %661 = vmatpush1.msra.mxu0 0.0
      %662 = vmatprep.subr.mxu0 0.0
      %663 = vmatpush1.msra.mxu0 0.0
      %664 = vmatprep.subr.mxu0 0.0
      %665 = vmatpush1.msra.mxu0 0.0
      %666 = vmatprep.subr.mxu0 0.0
      %667 = vmatpush1.msra.mxu0 0.0
      %668 = vmatprep.subr.mxu0 0.0
      %669 = vmatpush1.msra.mxu0 0.0
      %670 = vmatprep.subr.mxu0 0.0
      %671 = vmatpush1.msra.mxu0 0.0
      %672 = vmatprep.subr.mxu0 0.0
      %673 = vmatpush1.msra.mxu0 0.0
      %674 = vmatprep.subr.mxu0 0.0
      %675 = vmatpush1.msra.mxu0 0.0
      %676 = vmatprep.subr.mxu0 0.0
      %677 = vmatpush1.msra.mxu0 0.0
      %678 = vmatprep.subr.mxu0 0.0
      %679 = vmatpush1.msra.mxu0 0.0
      %680 = vmatprep.subr.mxu0 0.0
      %681 = vmatpush1.msra.mxu0 0.0
      %682 = vmatprep.subr.mxu0 0.0
      %683 = vmatpush1.msra.mxu0 0.0
      %684 = vmatprep.subr.mxu0 0.0
      %685 = vmatpush1.msra.mxu0 0.0
      %686 = vmatprep.subr.mxu0 0.0
      %687 = vmatpush1.msra.mxu0 0.0
      %688 = vmatprep.subr.mxu0 0.0
      %689 = vmatpush1.msra.mxu0 0.0
      %690 = vmatprep.subr.mxu0 0.0
      %691 = vmatpush1.msra.mxu0 0.0
      %692 = vmatprep.mubr.f32.mxu0 0.0
      %693 = vmatmul.mubr.f32.gmra.mrb[0].mxu0 %v603
      %v694 = vpop.f32.mrb[0].mxu0
      %v695 = vadd.f32 0.0, %v694
      %v696 = vpop.f32.mrb[0].mxu0
      %697 = vmatprep.mubr.f32.mxu0 0.0
      %698 = vmatmul.mubr.f32.gmra.mrb[0].mxu0 %v604
      %v699 = vpop.f32.mrb[0].mxu0
      %v700 = vadd.f32 0.0, %v699
      %v701 = vpop.f32.mrb[0].mxu0
      %702 = vmatprep.mubr.f32.mxu0 0.0
      %703 = vmatmul.mubr.f32.gmra.mrb[0].mxu0 %v605
      %v704 = vpop.f32.mrb[0].mxu0
      %v705 = vadd.f32 0.0, %v704
      %v706 = vpop.f32.mrb[0].mxu0
      %707 = vmatprep.mubr.f32.mxu0 0.0
      %708 = vmatmul.mubr.f32.gmra.mrb[0].mxu0 %v606
      %v709 = vpop.f32.mrb[0].mxu0
      %v710 = vadd.f32 0.0, %v709
      %v711 = vpop.f32.mrb[0].mxu0
      %712 = vmatprep.mubr.f32.mxu0 0.0
      %713 = vmatmul.mubr.f32.gmra.mrb[0].mxu0 %v607
      %v714 = vpop.f32.mrb[0].mxu0
      %v715 = vadd.f32 0.0, %v714
      %v716 = vpop.f32.mrb[0].mxu0
      %717 = vmatprep.mubr.f32.mxu0 0.0
      %718 = vmatmul.mubr.f32.gmra.mrb[0].mxu0 %v608
      %v719 = vpop.f32.mrb[0].mxu0
      %v720 = vadd.f32 0.0, %v719
      %v721 = vpop.f32.mrb[0].mxu0
      %722 = vmatprep.mubr.f32.mxu0 0.0
      %723 = vmatmul.mubr.f32.gmra.mrb[0].mxu0 %v609
      %v724 = vpop.f32.mrb[0].mxu0
      %v725 = vadd.f32 0.0, %v724
      %v726 = vpop.f32.mrb[0].mxu0
      %727 = vmatprep.mubr.f32.mxu0 0.0
      %728 = vmatmul.mubr.f32.gmra.mrb[0].mxu0 %v610
      %v729 = vpop.f32.mrb[0].mxu0
      %v730 = vadd.f32 0.0, %v729
      %v731 = vpop.f32.mrb[0].mxu0
      %732 = vdwg.mxu0
      %v733 = vadd.f32 %v592, %v695
      %v734 = vadd.f32 %v593, %v700
      %v735 = vadd.f32 %v594, %v705
      %v736 = vadd.f32 %v595, %v710
      %v737 = vadd.f32 %v596, %v715
      %v738 = vadd.f32 %v597, %v720
      %v739 = vadd.f32 %v598, %v725
      %v740 = vadd.f32 %v599, %v730
      %s741 = sadd.s32 %s194, 4
      %s742 = smul.u32 %s741, 8
      %s743 = scalar_lea.vmem %s183, %s742
      %v744 = vld [vmem:[%s743] sm:$0xff]
      %v745 = vld [vmem:[%s743 + $0x8] sm:$0xff]
      %v746 = vld [vmem:[%s743 + $0x10] sm:$0xff]
      %v747 = vld [vmem:[%s743 + $0x18] sm:$0xff]
      %v748 = vld [vmem:[%s743 + $0x20] sm:$0xff]
      %v749 = vld [vmem:[%s743 + $0x28] sm:$0xff]
      %v750 = vld [vmem:[%s743 + $0x30] sm:$0xff]
      %v751 = vld [vmem:[%s743 + $0x38] sm:$0xff]
      %s752 = scalar_lea.vmem %s1, 512
      %v753 = vld [vmem:[%s752] sm:$0xff]
      %v754 = vld [vmem:[%s752 + $0x8] sm:$0xff]
      %v755 = vld [vmem:[%s752 + $0x10] sm:$0xff]
      %v756 = vld [vmem:[%s752 + $0x18] sm:$0xff]
      %v757 = vld [vmem:[%s752 + $0x20] sm:$0xff]
      %v758 = vld [vmem:[%s752 + $0x28] sm:$0xff]
      %v759 = vld [vmem:[%s752 + $0x30] sm:$0xff]
      %v760 = vld [vmem:[%s752 + $0x38] sm:$0xff]
      %v761 = vld [vmem:[%s752 + $0x40] sm:$0xff]
      %v762 = vld [vmem:[%s752 + $0x48] sm:$0xff]
      %v763 = vld [vmem:[%s752 + $0x50] sm:$0xff]
      %v764 = vld [vmem:[%s752 + $0x58] sm:$0xff]
      %v765 = vld [vmem:[%s752 + $0x60] sm:$0xff]
      %v766 = vld [vmem:[%s752 + $0x68] sm:$0xff]
      %v767 = vld [vmem:[%s752 + $0x70] sm:$0xff]
      %v768 = vld [vmem:[%s752 + $0x78] sm:$0xff]
      %769 = vmatprep.subr.mxu0 0.0
      %770 = vmatpush1.msra.mxu0 %v753
      %771 = vmatprep.subr.mxu0 0.0
      %772 = vmatpush1.msra.mxu0 %v754
      %773 = vmatprep.subr.mxu0 0.0
      %774 = vmatpush1.msra.mxu0 %v755
      %775 = vmatprep.subr.mxu0 0.0
      %776 = vmatpush1.msra.mxu0 %v756
      %777 = vmatprep.subr.mxu0 0.0
      %778 = vmatpush1.msra.mxu0 %v757
      %779 = vmatprep.subr.mxu0 0.0
      %780 = vmatpush1.msra.mxu0 %v758
      %781 = vmatprep.subr.mxu0 0.0
      %782 = vmatpush1.msra.mxu0 %v759
      %783 = vmatprep.subr.mxu0 0.0
      %784 = vmatpush1.msra.mxu0 %v760
      %785 = vmatprep.subr.mxu0 0.0
      %786 = vmatpush1.msra.mxu0 %v761
      %787 = vmatprep.subr.mxu0 0.0
      %788 = vmatpush1.msra.mxu0 %v762
      %789 = vmatprep.subr.mxu0 0.0
      %790 = vmatpush1.msra.mxu0 %v763
      %791 = vmatprep.subr.mxu0 0.0
      %792 = vmatpush1.msra.mxu0 %v764
      %793 = vmatprep.subr.mxu0 0.0
      %794 = vmatpush1.msra.mxu0 %v765
      %795 = vmatprep.subr.mxu0 0.0
      %796 = vmatpush1.msra.mxu0 %v766
      %797 = vmatprep.subr.mxu0 0.0
      %798 = vmatpush1.msra.mxu0 %v767
      %799 = vmatprep.subr.mxu0 0.0
      %800 = vmatpush1.msra.mxu0 %v768
      %801 = vmatprep.subr.mxu0 0.0
      %802 = vmatpush1.msra.mxu0 0.0
      %803 = vmatprep.subr.mxu0 0.0
      %804 = vmatpush1.msra.mxu0 0.0
      %805 = vmatprep.subr.mxu0 0.0
      %806 = vmatpush1.msra.mxu0 0.0
      %807 = vmatprep.subr.mxu0 0.0
      %808 = vmatpush1.msra.mxu0 0.0
      %809 = vmatprep.subr.mxu0 0.0
      %810 = vmatpush1.msra.mxu0 0.0
      %811 = vmatprep.subr.mxu0 0.0
      %812 = vmatpush1.msra.mxu0 0.0
      %813 = vmatprep.subr.mxu0 0.0
      %814 = vmatpush1.msra.mxu0 0.0
      %815 = vmatprep.subr.mxu0 0.0
      %816 = vmatpush1.msra.mxu0 0.0
      %817 = vmatprep.subr.mxu0 0.0
      %818 = vmatpush1.msra.mxu0 0.0
      %819 = vmatprep.subr.mxu0 0.0
      %820 = vmatpush1.msra.mxu0 0.0
      %821 = vmatprep.subr.mxu0 0.0
      %822 = vmatpush1.msra.mxu0 0.0
      %823 = vmatprep.subr.mxu0 0.0
      %824 = vmatpush1.msra.mxu0 0.0
      %825 = vmatprep.subr.mxu0 0.0
      %826 = vmatpush1.msra.mxu0 0.0
      %827 = vmatprep.subr.mxu0 0.0
      %828 = vmatpush1.msra.mxu0 0.0
      %829 = vmatprep.subr.mxu0 0.0
      %830 = vmatpush1.msra.mxu0 0.0
      %831 = vmatprep.subr.mxu0 0.0
      %832 = vmatpush1.msra.mxu0 0.0
      %833 = vmatprep.mubr.f32.mxu0 0.0
      %834 = vmatmul.mubr.f32.gmra.mrb[0].mxu0 %v744
      %v835 = vpop.f32.mrb[0].mxu0
      %v836 = vadd.f32 0.0, %v835
      %v837 = vpop.f32.mrb[0].mxu0
      %838 = vmatprep.mubr.f32.mxu0 0.0
      %839 = vmatmul.mubr.f32.gmra.mrb[0].mxu0 %v745
      %v840 = vpop.f32.mrb[0].mxu0
      %v841 = vadd.f32 0.0, %v840
      %v842 = vpop.f32.mrb[0].mxu0
      %843 = vmatprep.mubr.f32.mxu0 0.0
      %844 = vmatmul.mubr.f32.gmra.mrb[0].mxu0 %v746
      %v845 = vpop.f32.mrb[0].mxu0
      %v846 = vadd.f32 0.0, %v845
      %v847 = vpop.f32.mrb[0].mxu0
      %848 = vmatprep.mubr.f32.mxu0 0.0
      %849 = vmatmul.mubr.f32.gmra.mrb[0].mxu0 %v747
      %v850 = vpop.f32.mrb[0].mxu0
      %v851 = vadd.f32 0.0, %v850
      %v852 = vpop.f32.mrb[0].mxu0
      %853 = vmatprep.mubr.f32.mxu0 0.0
      %854 = vmatmul.mubr.f32.gmra.mrb[0].mxu0 %v748
      %v855 = vpop.f32.mrb[0].mxu0
      %v856 = vadd.f32 0.0, %v855
      %v857 = vpop.f32.mrb[0].mxu0
      %858 = vmatprep.mubr.f32.mxu0 0.0
      %859 = vmatmul.mubr.f32.gmra.mrb[0].mxu0 %v749
      %v860 = vpop.f32.mrb[0].mxu0
      %v861 = vadd.f32 0.0, %v860
      %v862 = vpop.f32.mrb[0].mxu0
      %863 = vmatprep.mubr.f32.mxu0 0.0
      %864 = vmatmul.mubr.f32.gmra.mrb[0].mxu0 %v750
      %v865 = vpop.f32.mrb[0].mxu0
      %v866 = vadd.f32 0.0, %v865
      %v867 = vpop.f32.mrb[0].mxu0
      %868 = vmatprep.mubr.f32.mxu0 0.0
      %869 = vmatmul.mubr.f32.gmra.mrb[0].mxu0 %v751
      %v870 = vpop.f32.mrb[0].mxu0
      %v871 = vadd.f32 0.0, %v870
      %v872 = vpop.f32.mrb[0].mxu0
      %873 = vdwg.mxu0
      %v874 = vadd.f32 %v733, %v836
      %v875 = vadd.f32 %v734, %v841
      %v876 = vadd.f32 %v735, %v846
      %v877 = vadd.f32 %v736, %v851
      %v878 = vadd.f32 %v737, %v856
      %v879 = vadd.f32 %v738, %v861
      %v880 = vadd.f32 %v739, %v866
      %v881 = vadd.f32 %v740, %v871
      %s882 = sadd.s32 %s194, 5
      %s883 = smul.u32 %s882, 8
      %s884 = scalar_lea.vmem %s183, %s883
      %v885 = vld [vmem:[%s884] sm:$0xff]
      %v886 = vld [vmem:[%s884 + $0x8] sm:$0xff]
      %v887 = vld [vmem:[%s884 + $0x10] sm:$0xff]
      %v888 = vld [vmem:[%s884 + $0x18] sm:$0xff]
      %v889 = vld [vmem:[%s884 + $0x20] sm:$0xff]
      %v890 = vld [vmem:[%s884 + $0x28] sm:$0xff]
      %v891 = vld [vmem:[%s884 + $0x30] sm:$0xff]
      %v892 = vld [vmem:[%s884 + $0x38] sm:$0xff]
      %s893 = scalar_lea.vmem %s1, 640
      %v894 = vld [vmem:[%s893] sm:$0xff]
      %v895 = vld [vmem:[%s893 + $0x8] sm:$0xff]
      %v896 = vld [vmem:[%s893 + $0x10] sm:$0xff]
      %v897 = vld [vmem:[%s893 + $0x18] sm:$0xff]
      %v898 = vld [vmem:[%s893 + $0x20] sm:$0xff]
      %v899 = vld [vmem:[%s893 + $0x28] sm:$0xff]
      %v900 = vld [vmem:[%s893 + $0x30] sm:$0xff]
      %v901 = vld [vmem:[%s893 + $0x38] sm:$0xff]
      %v902 = vld [vmem:[%s893 + $0x40] sm:$0xff]
      %v903 = vld [vmem:[%s893 + $0x48] sm:$0xff]
      %v904 = vld [vmem:[%s893 + $0x50] sm:$0xff]
      %v905 = vld [vmem:[%s893 + $0x58] sm:$0xff]
      %v906 = vld [vmem:[%s893 + $0x60] sm:$0xff]
      %v907 = vld [vmem:[%s893 + $0x68] sm:$0xff]
      %v908 = vld [vmem:[%s893 + $0x70] sm:$0xff]
      %v909 = vld [vmem:[%s893 + $0x78] sm:$0xff]
      %910 = vmatprep.subr.mxu0 0.0
      %911 = vmatpush1.msra.mxu0 %v894
      %912 = vmatprep.subr.mxu0 0.0
      %913 = vmatpush1.msra.mxu0 %v895
      %914 = vmatprep.subr.mxu0 0.0
      %915 = vmatpush1.msra.mxu0 %v896
      %916 = vmatprep.subr.mxu0 0.0
      %917 = vmatpush1.msra.mxu0 %v897
      %918 = vmatprep.subr.mxu0 0.0
      %919 = vmatpush1.msra.mxu0 %v898
      %920 = vmatprep.subr.mxu0 0.0
      %921 = vmatpush1.msra.mxu0 %v899
      %922 = vmatprep.subr.mxu0 0.0
      %923 = vmatpush1.msra.mxu0 %v900
      %924 = vmatprep.subr.mxu0 0.0
      %925 = vmatpush1.msra.mxu0 %v901
      %926 = vmatprep.subr.mxu0 0.0
      %927 = vmatpush1.msra.mxu0 %v902
      %928 = vmatprep.subr.mxu0 0.0
      %929 = vmatpush1.msra.mxu0 %v903
      %930 = vmatprep.subr.mxu0 0.0
      %931 = vmatpush1.msra.mxu0 %v904
      %932 = vmatprep.subr.mxu0 0.0
      %933 = vmatpush1.msra.mxu0 %v905
      %934 = vmatprep.subr.mxu0 0.0
      %935 = vmatpush1.msra.mxu0 %v906
      %936 = vmatprep.subr.mxu0 0.0
      %937 = vmatpush1.msra.mxu0 %v907
      %938 = vmatprep.subr.mxu0 0.0
      %939 = vmatpush1.msra.mxu0 %v908
      %940 = vmatprep.subr.mxu0 0.0
      %941 = vmatpush1.msra.mxu0 %v909
      %942 = vmatprep.subr.mxu0 0.0
      %943 = vmatpush1.msra.mxu0 0.0
      %944 = vmatprep.subr.mxu0 0.0
      %945 = vmatpush1.msra.mxu0 0.0
      %946 = vmatprep.subr.mxu0 0.0
      %947 = vmatpush1.msra.mxu0 0.0
      %948 = vmatprep.subr.mxu0 0.0
      %949 = vmatpush1.msra.mxu0 0.0
      %950 = vmatprep.subr.mxu0 0.0
      %951 = vmatpush1.msra.mxu0 0.0
      %952 = vmatprep.subr.mxu0 0.0
      %953 = vmatpush1.msra.mxu0 0.0
      %954 = vmatprep.subr.mxu0 0.0
      %955 = vmatpush1.msra.mxu0 0.0
      %956 = vmatprep.subr.mxu0 0.0
      %957 = vmatpush1.msra.mxu0 0.0
      %958 = vmatprep.subr.mxu0 0.0
      %959 = vmatpush1.msra.mxu0 0.0
      %960 = vmatprep.subr.mxu0 0.0
      %961 = vmatpush1.msra.mxu0 0.0
      %962 = vmatprep.subr.mxu0 0.0
      %963 = vmatpush1.msra.mxu0 0.0
      %964 = vmatprep.subr.mxu0 0.0
      %965 = vmatpush1.msra.mxu0 0.0
      %966 = vmatprep.subr.mxu0 0.0
      %967 = vmatpush1.msra.mxu0 0.0
      %968 = vmatprep.subr.mxu0 0.0
      %969 = vmatpush1.msra.mxu0 0.0
      %970 = vmatprep.subr.mxu0 0.0
      %971 = vmatpush1.msra.mxu0 0.0
      %972 = vmatprep.subr.mxu0 0.0
      %973 = vmatpush1.msra.mxu0 0.0
      %974 = vmatprep.mubr.f32.mxu0 0.0
      %975 = vmatmul.mubr.f32.gmra.mrb[0].mxu0 %v885
      %v976 = vpop.f32.mrb[0].mxu0
      %v977 = vadd.f32 0.0, %v976
      %v978 = vpop.f32.mrb[0].mxu0
      %979 = vmatprep.mubr.f32.mxu0 0.0
      %980 = vmatmul.mubr.f32.gmra.mrb[0].mxu0 %v886
      %v981 = vpop.f32.mrb[0].mxu0
      %v982 = vadd.f32 0.0, %v981
      %v983 = vpop.f32.mrb[0].mxu0
      %984 = vmatprep.mubr.f32.mxu0 0.0
      %985 = vmatmul.mubr.f32.gmra.mrb[0].mxu0 %v887
      %v986 = vpop.f32.mrb[0].mxu0
      %v987 = vadd.f32 0.0, %v986
      %v988 = vpop.f32.mrb[0].mxu0
      %989 = vmatprep.mubr.f32.mxu0 0.0
      %990 = vmatmul.mubr.f32.gmra.mrb[0].mxu0 %v888
      %v991 = vpop.f32.mrb[0].mxu0
      %v992 = vadd.f32 0.0, %v991
      %v993 = vpop.f32.mrb[0].mxu0
      %994 = vmatprep.mubr.f32.mxu0 0.0
      %995 = vmatmul.mubr.f32.gmra.mrb[0].mxu0 %v889
      %v996 = vpop.f32.mrb[0].mxu0
      %v997 = vadd.f32 0.0, %v996
      %v998 = vpop.f32.mrb[0].mxu0
      %999 = vmatprep.mubr.f32.mxu0 0.0
      %1000 = vmatmul.mubr.f32.gmra.mrb[0].mxu0 %v890
      %v1001 = vpop.f32.mrb[0].mxu0
      %v1002 = vadd.f32 0.0, %v1001
      %v1003 = vpop.f32.mrb[0].mxu0
      %1004 = vmatprep.mubr.f32.mxu0 0.0
      %1005 = vmatmul.mubr.f32.gmra.mrb[0].mxu0 %v891
      %v1006 = vpop.f32.mrb[0].mxu0
      %v1007 = vadd.f32 0.0, %v1006
      %v1008 = vpop.f32.mrb[0].mxu0
      %1009 = vmatprep.mubr.f32.mxu0 0.0
      %1010 = vmatmul.mubr.f32.gmra.mrb[0].mxu0 %v892
      %v1011 = vpop.f32.mrb[0].mxu0
      %v1012 = vadd.f32 0.0, %v1011
      %v1013 = vpop.f32.mrb[0].mxu0
      %1014 = vdwg.mxu0
      %v1015 = vadd.f32 %v874, %v977
      %v1016 = vadd.f32 %v875, %v982
      %v1017 = vadd.f32 %v876, %v987
      %v1018 = vadd.f32 %v877, %v992
      %v1019 = vadd.f32 %v878, %v997
      %v1020 = vadd.f32 %v879, %v1002
      %v1021 = vadd.f32 %v880, %v1007
      %v1022 = vadd.f32 %v881, %v1012
      %v1023 = vld [vmem:[%s2] sm:$0x1]
      %v1025 = vlaneseq
      %v1026 = vshrl.u32 %v1025, 7
      %v1027 = vsub.s32 0, %v1026
      %v1028 = vrot.slane %v1023, %v1027
      %v1030 = vadd.f32 %v1015, %v1028
      %v1031 = vadd.f32 %v1016, %v1028
      %v1032 = vadd.f32 %v1017, %v1028
      %v1033 = vadd.f32 %v1018, %v1028
      %v1034 = vadd.f32 %v1019, %v1028
      %v1035 = vadd.f32 %v1020, %v1028
      %v1036 = vadd.f32 %v1021, %v1028
      %v1037 = vadd.f32 %v1022, %v1028
      %vm1038 = vcmp.ge.f32.partialorder %v1030, 0.0
      %vm1039 = vcmp.ge.f32.partialorder %v1031, 0.0
      %vm1040 = vcmp.ge.f32.partialorder %v1032, 0.0
      %vm1041 = vcmp.ge.f32.partialorder %v1033, 0.0
      %vm1042 = vcmp.ge.f32.partialorder %v1034, 0.0
      %vm1043 = vcmp.ge.f32.partialorder %v1035, 0.0
      %vm1044 = vcmp.ge.f32.partialorder %v1036, 0.0
      %vm1045 = vcmp.ge.f32.partialorder %v1037, 0.0
      %v1046 = vmul.f32 %v1030, 0.2
      %v1047 = vmul.f32 %v1031, 0.2
      %v1048 = vmul.f32 %v1032, 0.2
      %v1049 = vmul.f32 %v1033, 0.2
      %v1050 = vmul.f32 %v1034, 0.2
      %v1051 = vmul.f32 %v1035, 0.2
      %v1052 = vmul.f32 %v1036, 0.2
      %v1053 = vmul.f32 %v1037, 0.2
      %v1054 = vsel %vm1038, %v1030, %v1046
      %v1055 = vsel %vm1039, %v1031, %v1047
      %v1056 = vsel %vm1040, %v1032, %v1048
      %v1057 = vsel %vm1041, %v1033, %v1049
      %v1058 = vsel %vm1042, %v1034, %v1050
      %v1059 = vsel %vm1043, %v1035, %v1051
      %v1060 = vsel %vm1044, %v1036, %v1052
      %v1061 = vsel %vm1045, %v1037, %v1053
      %vm1062 = vcmask 261120
      %1063 = vst.msk [vmem:[%s192] sm:$0xff] %vm1062, %v1054
      %1064 = vst.msk [vmem:[%s192 + $0x8] sm:$0xff] %vm1062, %v1055
      %1065 = vst.msk [vmem:[%s192 + $0x10] sm:$0xff] %vm1062, %v1056
      %1066 = vst.msk [vmem:[%s192 + $0x18] sm:$0xff] %vm1062, %v1057
      %1067 = vst.msk [vmem:[%s192 + $0x20] sm:$0xff] %vm1062, %v1058
      %1068 = vst.msk [vmem:[%s192 + $0x28] sm:$0xff] %vm1062, %v1059
      %1069 = vst.msk [vmem:[%s192 + $0x30] sm:$0xff] %vm1062, %v1060
      %1070 = vst.msk [vmem:[%s192 + $0x38] sm:$0xff] %vm1062, %v1061
      %s1071 = smul.u32 8, %s19
      %p1072 = scmp.lt.s32.totalorder %s18, 1
      %s1073 = scalar_select %p1072, %s18, 1
      %p1074 = scmp.lt.s32.totalorder %s1071, 7
      %s1075 = scalar_select %p1074, %s1071, 7
      %s1076 = smul.addr %s1073, 8
      %s1077 = sadd.s32 %s1075, %s1076
      %s1078 = smul.addr %s1077, 8
      %s1079 = scalar_lea.vmem %s3, %s1078
      // Predicated region
      $region33: #{tpu_custom_call.1} parent=31 // pred_check
        %p1080 = pneg %p114
      $region34: #{tpu_custom_call.1} parent=31 // pred_check_branch
        %1082 = sbr.rel (%p1080) target = $region36
      $region35: #{tpu_custom_call.1} parent=31 // pred_region
        %s1083 = smul.u32 8, %s19
      $region36: #{tpu_custom_call.1} parent=31 // pred_fallthru
        _
    $region32: #{tpu_custom_call.1} parent=5 // pred_fallthru
      _
    %p1084 = scmp.le.s32.totalorder 2, %s9
    // Predicated region
    $region37: #{tpu_custom_call.1} parent=5 // pred_check
      %p1085 = pneg %p1084
    $region38: #{tpu_custom_call.1} parent=5 // pred_check_branch
      %1087 = sbr.rel (%p1085) target = $region40
    $region39: #{tpu_custom_call.1} parent=5 // pred_region
      %s1088 = ssub.s32 %s9, 2
      // Predicated region
      $region41: #{tpu_custom_call.1} parent=39 // pred_check
        %p1089 = pneg %p120
      $region42: #{tpu_custom_call.1} parent=39 // pred_check_branch
        %1091 = sbr.rel (%p1089) target = $region44
      $region43: #{tpu_custom_call.1} parent=39 // pred_region
        %s1092 = smul.u32 8, %s21
        %p1093 = scmp.lt.s32.totalorder %s20, 1
        %s1094 = scalar_select %p1093, %s20, 1
        %p1095 = scmp.lt.s32.totalorder %s1092, 7
        %s1096 = scalar_select %p1095, %s1092, 7
        %s1097 = smul.addr %s1094, 8
        %s1098 = sadd.s32 %s1096, %s1097
        %s1099 = smul.addr %s1098, 8
        %s1100 = scalar_lea.vmem %s3, %s1099
      $region44: #{tpu_custom_call.1} parent=39 // pred_fallthru
        _
    $region40: #{tpu_custom_call.1} parent=5 // pred_fallthru
      _
  $region6: #{tpu_custom_call.1} parent=0 // loop_footer
    %s13 = sadd.s32 1, %s9
  $region7: #{tpu_custom_call.1} parent=0 // loop_footer_branch
    %8 = sbr.rel target = $region3
  $region8: #{tpu_custom_call.1} parent=0 // loop_exit
    _

</llo_original>
